<compile_context>
chip_gen: v7x
topology: tpu7x:2x2x1
jax: 0.10.0
libtpu: 0.0.40
codegen_flags: <defaults>
</compile_context>

<pallas_src>
import jax
import jax.numpy as jnp
from jax.experimental import pallas as pl
from jax.experimental.pallas import tpu as pltpu

PREDICTIONS = "predictions"
LOGITS = "logits"

# Skip the on-device materializing copy for tiny tensors: kernel launch + DMA
# descriptor setup (~µs) dominates below roughly 1 MiB per tensor.
_DEFAULT_SIZE_GATE_BYTES = 1 << 20


def _hbm_copy_pair_kernel(pred_in, logit_in, pred_out, logit_out, sem):
    # Direct HBM->HBM async copies: no VMEM staging, no grid, no tiling
    # constraints.  Start both DMAs before waiting so they overlap.
    cp_pred = pltpu.make_async_copy(pred_in, pred_out, sem.at[0])
    cp_logit = pltpu.make_async_copy(logit_in, logit_out, sem.at[1])
    cp_pred.start()
    cp_logit.start()
    cp_pred.wait()
    cp_logit.wait()


def _pallas_copy_pair(a: jax.Array, b: jax.Array):
    """Materializing copy of two tensors (any shapes/dtypes) in ONE pallas_call
    using direct HBM->HBM DMA — no VMEM, no grid, no vector load/store work."""
    any_spec = pl.BlockSpec(memory_space=pl.ANY)
    return pl.pallas_call(
        _hbm_copy_pair_kernel,
        out_shape=(
            jax.ShapeDtypeStruct(a.shape, a.dtype),
            jax.ShapeDtypeStruct(b.shape, b.dtype),
        ),
        in_specs=[any_spec, any_spec],
        out_specs=(any_spec, any_spec),
        scratch_shapes=[pltpu.SemaphoreType.DMA((2,))],
    )(a, b)


def get_output_feature_tensor(preds, feature_name, key):
    # Mirrors ludwig.utils.output_feature_utils.get_output_feature_tensor:
    # nested dict lookup keyed as f"{feature_name}::{key}".
    return preds[f"{feature_name}::{key}"]


class VectorPostprocessing:
    """JAX/Pallas equivalent of ludwig _VectorPostprocessing.

    The forward pass is semantically a dict lookup + passthrough.  With
    materialize=False (or when both tensors are below the size gate) the
    arrays are returned untouched — zero kernel cost, the recommended
    production path.  Otherwise the two tensors are routed through a single
    fused Pallas HBM->HBM DMA copy.
    """

    def __init__(self, materialize: bool = True,
                 size_gate_bytes: int = _DEFAULT_SIZE_GATE_BYTES):
        self.predictions_key = PREDICTIONS
        self.logits_key = LOGITS
        self.materialize = materialize
        self.size_gate_bytes = size_gate_bytes

    def __call__(self, preds, feature_name: str):
        predictions = get_output_feature_tensor(preds, feature_name, self.predictions_key)
        logits = get_output_feature_tensor(preds, feature_name, self.logits_key)
        if self.materialize:
            pred_bytes = predictions.size * jnp.dtype(predictions.dtype).itemsize
            logit_bytes = logits.size * jnp.dtype(logits.dtype).itemsize
            if max(pred_bytes, logit_bytes) >= self.size_gate_bytes:
                predictions, logits = _pallas_copy_pair(predictions, logits)
        return {self.predictions_key: predictions, self.logits_key: logits}


if __name__ == "__main__":
    key = jax.random.PRNGKey(0)
    k1, k2 = jax.random.split(key)

    batch, vector_size = 8, 32       # dense [batch, vector_size] vector feature
    feature_name = "vec_feat"

    predictions = jax.random.normal(k1, (batch, vector_size), dtype=jnp.float32)
    logits = jax.random.normal(k2, (batch, vector_size), dtype=jnp.float32)

    preds = {
        f"{feature_name}::{PREDICTIONS}": predictions,
        f"{feature_name}::{LOGITS}": logits,
    }

    # size_gate_bytes=0 forces the Pallas DMA copy to run even at demo sizes.
    module = VectorPostprocessing(materialize=True, size_gate_bytes=0)
    out = module(preds, feature_name)

    jax.block_until_ready(out[PREDICTIONS])
    jax.block_until_ready(out[LOGITS])

    assert out[PREDICTIONS].shape == (batch, vector_size)
    assert out[LOGITS].shape == (batch, vector_size)
    assert jnp.allclose(out[PREDICTIONS], predictions)
    assert jnp.allclose(out[LOGITS], logits)

    # Also exercise the zero-cost production path (size-gated passthrough).
    gated = VectorPostprocessing(materialize=True)(preds, feature_name)
    assert jnp.allclose(gated[PREDICTIONS], predictions)
    assert jnp.allclose(gated[LOGITS], logits)

    print("KERNEL_OK")
</pallas_src>

<mosaic_0001>
module attributes {stable_mosaic.version = 11 : i64} {
  func.func @_hbm_copy_pair_kernel(%arg0: memref<8x32xf32, #tpu.memory_space<any>>, %arg1: memref<8x32xf32, #tpu.memory_space<any>>, %arg2: memref<8x32xf32, #tpu.memory_space<any>>, %arg3: memref<8x32xf32, #tpu.memory_space<any>>, %arg4: memref<2x!tpu.dma_semaphore, #tpu.memory_space<semaphore_mem>>) attributes {dimension_semantics = [], scalar_prefetch = 0 : i64, scratch_operands = 1 : i64, tpu.core_type = #tpu.core_type<tc>} {
    %c0_i32 = arith.constant 0 : i32
    %0 = tpu.memref_slice %arg4[%c0_i32] : memref<2x!tpu.dma_semaphore, #tpu.memory_space<semaphore_mem>> -> memref<1x!tpu.dma_semaphore, #tpu.memory_space<semaphore_mem>>
    %1 = tpu.memref_squeeze %0 : memref<1x!tpu.dma_semaphore, #tpu.memory_space<semaphore_mem>> -> memref<!tpu.dma_semaphore, #tpu.memory_space<semaphore_mem>>
    tpu.enqueue_dma source(%arg0 : memref<8x32xf32, #tpu.memory_space<any>>) target(%arg2 : memref<8x32xf32, #tpu.memory_space<any>>) target_semaphore(%1 : memref<!tpu.dma_semaphore, #tpu.memory_space<semaphore_mem>>)
    %c1_i32 = arith.constant 1 : i32
    %2 = tpu.memref_slice %arg4[%c1_i32] : memref<2x!tpu.dma_semaphore, #tpu.memory_space<semaphore_mem>> -> memref<1x!tpu.dma_semaphore, #tpu.memory_space<semaphore_mem>>
    %3 = tpu.memref_squeeze %2 : memref<1x!tpu.dma_semaphore, #tpu.memory_space<semaphore_mem>> -> memref<!tpu.dma_semaphore, #tpu.memory_space<semaphore_mem>>
    tpu.enqueue_dma source(%arg1 : memref<8x32xf32, #tpu.memory_space<any>>) target(%arg3 : memref<8x32xf32, #tpu.memory_space<any>>) target_semaphore(%3 : memref<!tpu.dma_semaphore, #tpu.memory_space<semaphore_mem>>)
    %c0_i32_0 = arith.constant 0 : i32
    %4 = tpu.memref_slice %arg4[%c0_i32_0] : memref<2x!tpu.dma_semaphore, #tpu.memory_space<semaphore_mem>> -> memref<1x!tpu.dma_semaphore, #tpu.memory_space<semaphore_mem>>
    %5 = tpu.memref_squeeze %4 : memref<1x!tpu.dma_semaphore, #tpu.memory_space<semaphore_mem>> -> memref<!tpu.dma_semaphore, #tpu.memory_space<semaphore_mem>>
    tpu.wait_dma2 semaphore(%5 : memref<!tpu.dma_semaphore, #tpu.memory_space<semaphore_mem>>) src(%arg0 : memref<8x32xf32, #tpu.memory_space<any>>) dst(%arg2 : memref<8x32xf32, #tpu.memory_space<any>>)
    %c1_i32_1 = arith.constant 1 : i32
    %6 = tpu.memref_slice %arg4[%c1_i32_1] : memref<2x!tpu.dma_semaphore, #tpu.memory_space<semaphore_mem>> -> memref<1x!tpu.dma_semaphore, #tpu.memory_space<semaphore_mem>>
    %7 = tpu.memref_squeeze %6 : memref<1x!tpu.dma_semaphore, #tpu.memory_space<semaphore_mem>> -> memref<!tpu.dma_semaphore, #tpu.memory_space<semaphore_mem>>
    tpu.wait_dma2 semaphore(%7 : memref<!tpu.dma_semaphore, #tpu.memory_space<semaphore_mem>>) src(%arg1 : memref<8x32xf32, #tpu.memory_space<any>>) dst(%arg3 : memref<8x32xf32, #tpu.memory_space<any>>)
    return
  }
}

</mosaic_0001>

<llo_original>
// kernel: tpu_custom_call.1
$region0: #{tpu_custom_call.1}
  #allocation0 [shape = 'u32[]', space=smem, size = 0x4, offset = 0x4, fixed_abs, tag = 'smem constant byte address 0x4 - core index']
  #allocation1 [shape = 'u32[144,128]{1,0:T(1,128)}', space=vmem, size = 0x12000, scoped, tag = 'internal scratch']
  #allocation2 [shape = 's32[2]{0}', space=sflag, size = 0x8, scoped, tag = 'scratch operand']
  #allocation3 [shape = 's32[]', space=sflag, size = 0x4, offset = 0, fixed_abs, tag = 'sflag constant byte address 0x0 - dummy sync flag']
  #allocation4 [shape = 'u32[0]{0}', space=smem, size = 0, offset = 0, fixed_abs, tag = 'smem constant byte address 0x0 - null']
  #allocation5 [shape = 's32[]', space=sflag, size = 0x4, offset = 0, fixed_abs, tag = 'sflag constant byte address 0x0 - dummy sync flag']
  #allocation6 [shape = 'u32[0]{0}', space=smem, size = 0, offset = 0, fixed_abs, tag = 'smem constant byte address 0x0 - null']
  %s0 = inlined_call_operand.hbm [shape: f32[8,32], index: 0, kind: input, shape index: {}]
  %s1 = inlined_call_operand.hbm [shape: f32[8,32], index: 1, kind: input, shape index: {}]
  %s2 = inlined_call_operand.hbm [shape: f32[8,32], index: 2, kind: output, shape index: {0}]
  %s3 = inlined_call_operand.hbm [shape: f32[8,32], index: 3, kind: output, shape index: {1}]
  %4 = xla_tuple %s2, %s3
  %s5 = sld [smem:[#allocation0]]
  $region2: #{tpu_custom_call.1} parent=0
    _
  %s7 = ssub.s32 1, %s5
  %s8 = scalar_select 0, %s7, %s5
  %s10 = sshll.u32 1, 14
  %s11 = sxor.u32 4294967295, %s10
  %s14 = sshll.u32 3, 24
  %s15 = sxor.u32 4294967295, %s14
  %s16 = sand.u32 0, %s15
  %s18 = sor.u32 %s16, 0
  %21 = dma.general %s0, 128, %s2, [#allocation2], [#allocation3], [#allocation4], %s18, 0
  %s22 = scalar_lea.sflag [#allocation2], 1
  %s24 = sshll.u32 1, 14
  %s25 = sxor.u32 4294967295, %s24
  %s28 = sshll.u32 3, 24
  %s29 = sxor.u32 4294967295, %s28
  %s30 = sand.u32 0, %s29
  %s32 = sor.u32 %s30, 0
  %35 = dma.general %s1, 128, %s3, %s22, [#allocation5], [#allocation6], %s32, 0
  %s36 = smul.u32 8, 1
  %s37 = sshll.u32 %s36, 4
  %38 = dma.done [#allocation2], %s37
  %s39 = sshll.u32 %s36, 4
  %40 = dma.done %s22, %s39
  %41 = vsyncmov [#allocation2]
  %s42 = vpop.sfrf %41
  %p43 = scmp.eq.s32.totalorder %s42, 0
  %p44 = pneg %p43
  %46 = shalt.err (%p44)
  %s47 = scalar_lea.sflag [#allocation2], 1
  %48 = vsyncmov %s47
  %s49 = vpop.sfrf %48
  %p50 = scmp.eq.s32.totalorder %s49, 0
  %p51 = pneg %p50
  %53 = shalt.err (%p51)

</llo_original>
